<compile_context>
chip_gen: v7x
topology: tpu7x:2x2x1
jax: 0.10.0
libtpu: 0.0.40
codegen_flags: <defaults>
</compile_context>

<pallas_src>
import jax
import jax.numpy as jnp
from jax.experimental import pallas as pl
from jax.experimental.pallas import tpu as pltpu

RRELU_SLOPE = (1.0 / 8.0 + 1.0 / 3.0) / 2.0  # eval-mode RReLU negative slope
BN_EPS = 1e-5


def _vmem_limit_bytes():
    """Per-generation VMEM limit: ~3/4 of physical, capped at 100 MiB."""
    try:
        cap = int(pltpu.get_tpu_info().vmem_capacity_bytes)
    except Exception:
        cap = 64 * 1024 * 1024  # conservative fallback (v7x-sized)
    return int(min(cap * 3 // 4, 100 * 1024 * 1024))


# ----------------------------------------------------------------------------
# Kernel 1: ConvTranspose2d(k=2, s=2), interleaved lane-dense output
# ----------------------------------------------------------------------------
def _pallas_upsample(x1, up_w, up_b):
    """x1: [N,H,W,Cin] f32.  up_w (PyTorch): [Cin,Cout,2,2].

    Returns bf16 [N, 2H, 2W, Cout] (already interleaved; no XLA transpose).
    """
    n, h, w, cin = x1.shape
    cout = up_w.shape[1]

    # Per output-row-parity weight: [kh, Cin, 2*Cout], columns ordered (kw, co)
    w_rows = (jnp.transpose(up_w, (2, 0, 3, 1))
              .reshape(2, cin, 2 * cout).astype(jnp.bfloat16))
    # Bias replicated over the two kw slots: [1, 2*Cout]
    b_row = jnp.tile(up_b.astype(jnp.float32), 2).reshape(1, 2 * cout)

    def kernel(x1_ref, w_ref, b_ref, o_ref):
        x1f = x1_ref[...].reshape(h * w, cin).astype(jnp.bfloat16)
        for kh in range(2):  # static unroll: 2 matmuls, 2 stores
            y = jnp.dot(x1f, w_ref[kh], preferred_element_type=jnp.float32)
            y = y + b_ref[...]
            o_ref[:, kh, :, :] = y.reshape(h, w, 2 * cout).astype(o_ref.dtype)

    out = pl.pallas_call(
        kernel,
        out_shape=jax.ShapeDtypeStruct((n, h, 2, w, 2 * cout), jnp.bfloat16),
        grid=(n,),
        in_specs=[
            pl.BlockSpec((None, h, w, cin), lambda b: (b, 0, 0, 0)),
            pl.BlockSpec((2, cin, 2 * cout), lambda b: (0, 0, 0)),
            pl.BlockSpec((1, 2 * cout), lambda b: (0, 0)),
        ],
        out_specs=pl.BlockSpec((None, h, 2, w, 2 * cout),
                               lambda b: (b, 0, 0, 0, 0)),
        compiler_params=pltpu.CompilerParams(
            dimension_semantics=("parallel",),
            vmem_limit_bytes=_vmem_limit_bytes()),
    )(x1, w_rows, b_row)

    # (N, H, 2, W, 2*Cout) row-major == (N, 2H, 2W, Cout): free reshape.
    return out.reshape(n, 2 * h, 2 * w, cout)


# ----------------------------------------------------------------------------
# Kernel 2: fused [split-K conv3x3+BN+RReLU -> conv3x3+BN+RReLU]
# ----------------------------------------------------------------------------
def _fold_bn(conv_w, conv_b, gamma, beta, mean, var):
    """Fold conv bias + eval BatchNorm into tap weights (scale folded in) and
    a per-channel shift.

    conv_w: [Cout, Cin, 3, 3] -> taps [9, Cin, Cout] (tap-major, t = kh*3+kw).
    """
    inv = gamma / jnp.sqrt(var + BN_EPS)            # (Cout,)
    shift = inv * (conv_b - mean) + beta            # (Cout,)
    cin = conv_w.shape[1]
    cout = conv_w.shape[0]
    w_taps = jnp.transpose(conv_w, (2, 3, 1, 0)).reshape(9, cin, cout)
    w_taps = w_taps * inv[None, None, :]            # BN scale into out columns
    return w_taps.astype(jnp.float32), shift.reshape(1, cout).astype(jnp.float32)


def _make_fused_conv_kernel(oh, ow, cout, cskip):
    def _zero_border(ref):
        ph, pw, c = ref.shape
        z_row = jnp.zeros((1, pw, c), ref.dtype)
        ref[pl.ds(0, 1), :, :] = z_row
        ref[pl.ds(ph - 1, 1), :, :] = z_row
        z_col = jnp.zeros((ph, 1, c), ref.dtype)
        ref[:, pl.ds(0, 1), :] = z_col
        ref[:, pl.ds(pw - 1, 1), :] = z_col

    def _conv3x3(pad_and_weight, shift_ref):
        """9-tap matmul accumulation; K split across the given (pad, W) pairs."""
        acc = None
        for kh in range(3):
            for kw in range(3):
                t = kh * 3 + kw
                for pad_ref, w_ref in pad_and_weight:
                    c_in = pad_ref.shape[-1]
                    a = pad_ref[pl.ds(kh, oh), pl.ds(kw, ow), :]
                    a = a.reshape(oh * ow, c_in)
                    d = jnp.dot(a, w_ref[t], preferred_element_type=jnp.float32)
                    acc = d if acc is None else acc + d
        y = acc + shift_ref[...]                       # folded BN/bias shift
        return jnp.where(y >= 0.0, y, y * RRELU_SLOPE)  # eval-mode RReLU

    def kernel(up_ref, x2_ref, w1u_ref, w1s_ref, t1_ref, w2_ref, t2_ref,
               o_ref, up_pad, x2_pad, mid_pad):
        # Zero only the 1-px borders (interior fully overwritten every step;
        # done every step so megacore grid sharding stays correct).
        _zero_border(up_pad)
        _zero_border(x2_pad)
        _zero_border(mid_pad)

        # Padded bf16 activations in VMEM (no concat: K is split over up|skip).
        up_pad[pl.ds(1, oh), pl.ds(1, ow), :] = up_ref[...]
        x2_pad[pl.ds(1, oh), pl.ds(1, ow), :] = x2_ref[...].astype(jnp.bfloat16)

        # conv1 (3x3, pad 1) + BN + RReLU, K split over [up | skip]
        y1 = _conv3x3([(up_pad, w1u_ref), (x2_pad, w1s_ref)], t1_ref)
        mid_pad[pl.ds(1, oh), pl.ds(1, ow), :] = (
            y1.reshape(oh, ow, cout).astype(jnp.bfloat16))

        # conv2 (3x3, pad 1) + BN + RReLU
        y2 = _conv3x3([(mid_pad, w2_ref)], t2_ref)

        # Lane-dense store: (OH, OW*Cout) is layout-identical to (OH, OW, Cout).
        o_ref[...] = y2.reshape(oh, ow * cout).astype(o_ref.dtype)

    return kernel


def _pallas_fused_convs(up, x2, p):
    """up: [N,OH,OW,Cout] bf16, x2: [N,OH,OW,Cskip] f32 -> [N,OH,OW,Cout] f32."""
    n, oh, ow, cout = up.shape
    cskip = x2.shape[-1]

    w1_taps, t1 = _fold_bn(p["conv1_w"], p["conv1_b"], p["bn1_gamma"],
                           p["bn1_beta"], p["bn1_mean"], p["bn1_var"])
    w2_taps, t2 = _fold_bn(p["conv2_w"], p["conv2_b"], p["bn2_gamma"],
                           p["bn2_beta"], p["bn2_mean"], p["bn2_var"])
    # Concat order in PyTorch is cat((up, x2), dim=1): split conv1's K rows.
    w1u = w1_taps[:, :cout, :].astype(jnp.bfloat16)    # (9, Cout,  Cout)
    w1s = w1_taps[:, cout:, :].astype(jnp.bfloat16)    # (9, Cskip, Cout)
    w2b = w2_taps.astype(jnp.bfloat16)                 # (9, Cout,  Cout)

    kernel = _make_fused_conv_kernel(oh, ow, cout, cskip)

    out = pl.pallas_call(
        kernel,
        out_shape=jax.ShapeDtypeStruct((n, oh, ow * cout), jnp.float32),
        grid=(n,),
        in_specs=[
            pl.BlockSpec((None, oh, ow, cout), lambda b: (b, 0, 0, 0)),
            pl.BlockSpec((None, oh, ow, cskip), lambda b: (b, 0, 0, 0)),
            pl.BlockSpec((9, cout, cout), lambda b: (0, 0, 0)),
            pl.BlockSpec((9, cskip, cout), lambda b: (0, 0, 0)),
            pl.BlockSpec((1, cout), lambda b: (0, 0)),
            pl.BlockSpec((9, cout, cout), lambda b: (0, 0, 0)),
            pl.BlockSpec((1, cout), lambda b: (0, 0)),
        ],
        out_specs=pl.BlockSpec((None, oh, ow * cout), lambda b: (b, 0, 0)),
        scratch_shapes=[
            pltpu.VMEM((oh + 2, ow + 2, cout), jnp.bfloat16),   # padded up
            pltpu.VMEM((oh + 2, ow + 2, cskip), jnp.bfloat16),  # padded skip
            pltpu.VMEM((oh + 2, ow + 2, cout), jnp.bfloat16),   # padded conv1 out
        ],
        compiler_params=pltpu.CompilerParams(
            dimension_semantics=("parallel",),
            vmem_limit_bytes=_vmem_limit_bytes()),
    )(up, x2, w1u, w1s, t1, w2b, t2)

    return out.reshape(n, oh, ow, cout)


# ----------------------------------------------------------------------------
# Decoder forward (glue in plain JAX, hot paths in Pallas)
# ----------------------------------------------------------------------------
def decoder_forward(x1_nchw, x2_nchw, p):
    x1 = jnp.transpose(x1_nchw, (0, 2, 3, 1)).astype(jnp.float32)  # NHWC
    x2 = jnp.transpose(x2_nchw, (0, 2, 3, 1)).astype(jnp.float32)
    up = _pallas_upsample(x1, p["up_w"], p["up_b"])   # bf16, already interleaved
    y = _pallas_fused_convs(up, x2, p)
    return jnp.transpose(y, (0, 3, 1, 2))  # back to NCHW


# ----------------------------------------------------------------------------
# Pure-JAX reference (independent path via lax.conv) for validation
# ----------------------------------------------------------------------------
def decoder_reference(x1_nchw, x2_nchw, p):
    x1 = jnp.transpose(x1_nchw, (0, 2, 3, 1)).astype(jnp.float32)
    x2 = jnp.transpose(x2_nchw, (0, 2, 3, 1)).astype(jnp.float32)
    n, h, w, _ = x1.shape
    cout = p["up_w"].shape[1]

    y = jnp.einsum("nhwi,iokl->nhwklo", x1, p["up_w"]) + p["up_b"]
    y = jnp.transpose(y, (0, 1, 3, 2, 4, 5)).reshape(n, 2 * h, 2 * w, cout)
    x = jnp.concatenate([y, x2], axis=-1)

    def block(x, wt, b, g, bt, m, v):
        w_hwio = jnp.transpose(wt, (2, 3, 1, 0))
        z = jax.lax.conv_general_dilated(
            x, w_hwio, (1, 1), "SAME",
            dimension_numbers=("NHWC", "HWIO", "NHWC")) + b
        z = g * (z - m) / jnp.sqrt(v + BN_EPS) + bt
        return jnp.where(z >= 0, z, z * RRELU_SLOPE)

    x = block(x, p["conv1_w"], p["conv1_b"],
              p["bn1_gamma"], p["bn1_beta"], p["bn1_mean"], p["bn1_var"])
    x = block(x, p["conv2_w"], p["conv2_b"],
              p["bn2_gamma"], p["bn2_beta"], p["bn2_mean"], p["bn2_var"])
    return jnp.transpose(x, (0, 3, 1, 2))


# ----------------------------------------------------------------------------
# Deterministic parameter init (shapes per nn.Module.__init__)
# ----------------------------------------------------------------------------
def init_params(key, in_ch, mid_ch, out_ch):
    ks = jax.random.split(key, 6)
    f32 = jnp.float32
    p = {
        "up_w": jax.random.normal(ks[0], (in_ch, out_ch, 2, 2), f32) * 0.1,
        "up_b": jax.random.normal(ks[1], (out_ch,), f32) * 0.1,
        "conv1_w": jax.random.normal(ks[2], (out_ch, mid_ch, 3, 3), f32) * 0.1,
        "conv1_b": jax.random.normal(ks[3], (out_ch,), f32) * 0.1,
        "conv2_w": jax.random.normal(ks[4], (out_ch, out_ch, 3, 3), f32) * 0.1,
        "conv2_b": jax.random.normal(ks[5], (out_ch,), f32) * 0.1,
    }
    for i in (1, 2):
        p[f"bn{i}_gamma"] = jnp.linspace(0.9, 1.1, out_ch).astype(f32)
        p[f"bn{i}_beta"] = jnp.linspace(-0.05, 0.05, out_ch).astype(f32)
        p[f"bn{i}_mean"] = jnp.linspace(-0.1, 0.1, out_ch).astype(f32)
        p[f"bn{i}_var"] = jnp.linspace(0.8, 1.2, out_ch).astype(f32)
    return p


if __name__ == "__main__":
    in_ch, mid_ch, out_ch = 8, 16, 8
    N, H, W = 2, 8, 8  # x1 spatial; x2 spatial is 2x (U-Net skip)

    key = jax.random.PRNGKey(0)
    k1, k2, kp = jax.random.split(key, 3)
    x1 = jax.random.normal(k1, (N, in_ch, H, W), jnp.float32)
    x2 = jax.random.normal(k2, (N, mid_ch - out_ch, 2 * H, 2 * W), jnp.float32)
    params = init_params(kp, in_ch, mid_ch, out_ch)

    out = decoder_forward(x1, x2, params)
    out = jax.block_until_ready(out)

    assert out.shape == (N, out_ch, 2 * H, 2 * W), out.shape
    ref = decoder_reference(x1, x2, params)
    # bf16 MXU operands (f32 accumulate) -> ~1% worst-case error vs f32 ref.
    if not bool(jnp.allclose(out, ref, atol=2e-2, rtol=2e-2)):
        err = float(jnp.max(jnp.abs(out - ref)))
        raise AssertionError(f"Pallas output mismatch vs reference (max abs err {err})")

    print("KERNEL_OK")
</pallas_src>

<mosaic_0001>
module attributes {stable_mosaic.version = 11 : i64} {
  func.func @kernel(%arg0: i32, %arg1: memref<1x8x8x8xf32, #tpu.memory_space<vmem>>, %arg2: memref<2x8x16xbf16, #tpu.memory_space<vmem>>, %arg3: memref<1x16xf32, #tpu.memory_space<vmem>>, %arg4: memref<1x8x2x8x16xbf16, #tpu.memory_space<vmem>>) attributes {dimension_semantics = [#tpu.dimension_semantics<parallel>], iteration_bounds = array<i64: 2>, scalar_prefetch = 0 : i64, scratch_operands = 0 : i64, tpu.core_type = #tpu.core_type<tc>, window_params = [{transform_indices = @transform_0, window_bounds = array<i64: 1, 8, 8, 8>}, {pipeline_mode = #tpu.pipeline_mode<synchronous>, transform_indices = @transform_1, window_bounds = array<i64: 2, 8, 16>}, {pipeline_mode = #tpu.pipeline_mode<synchronous>, transform_indices = @transform_2, window_bounds = array<i64: 1, 16>}, {transform_indices = @transform_3, window_bounds = array<i64: 1, 8, 2, 8, 16>}]} {
    %c0 = arith.constant 0 : index
    %c0_0 = arith.constant 0 : index
    %c0_1 = arith.constant 0 : index
    %c0_2 = arith.constant 0 : index
    %0 = vector.load %arg1[%c0, %c0_0, %c0_1, %c0_2] : memref<1x8x8x8xf32, #tpu.memory_space<vmem>>, vector<1x8x8x8xf32>
    %1 = vector.shape_cast %0 : vector<1x8x8x8xf32> to vector<8x8x8xf32>
    %2 = vector.shape_cast %1 : vector<8x8x8xf32> to vector<64x8xf32>
    %3 = arith.truncf %2 : vector<64x8xf32> to vector<64x8xbf16>
    %c0_3 = arith.constant 0 : index
    %c0_4 = arith.constant 0 : index
    %c0_5 = arith.constant 0 : index
    %4 = vector.load %arg2[%c0_3, %c0_4, %c0_5] : memref<2x8x16xbf16, #tpu.memory_space<vmem>>, vector<1x8x16xbf16>
    %5 = vector.shape_cast %4 : vector<1x8x16xbf16> to vector<8x16xbf16>
    %cst = arith.constant dense<0.000000e+00> : vector<64x16xf32>
    %6 = tpu.matmul %3, %5, %cst {dimension_numbers = #tpu.dot_dimension_numbers<[1], [0], [0], [1], [0, 0, 1, 1], [], []>} : vector<64x8xbf16>, vector<8x16xbf16>, vector<64x16xf32> -> vector<64x16xf32>
    %c0_6 = arith.constant 0 : index
    %c0_7 = arith.constant 0 : index
    %7 = vector.load %arg3[%c0_6, %c0_7] : memref<1x16xf32, #tpu.memory_space<vmem>>, vector<1x16xf32>
    %8 = vector.broadcast %7 : vector<1x16xf32> to vector<64x16xf32>
    %9 = arith.addf %6, %8 : vector<64x16xf32>
    %10 = vector.shape_cast %9 : vector<64x16xf32> to vector<8x8x16xf32>
    %11 = arith.truncf %10 : vector<8x8x16xf32> to vector<8x8x16xbf16>
    %c0_8 = arith.constant 0 : index
    %c0_9 = arith.constant 0 : index
    %c0_10 = arith.constant 0 : index
    %c0_11 = arith.constant 0 : index
    %c0_12 = arith.constant 0 : index
    %12 = vector.load %arg4[%c0_8, %c0_9, %c0_10, %c0_11, %c0_12] : memref<1x8x2x8x16xbf16, #tpu.memory_space<vmem>>, vector<1x8x1x8x16xbf16>
    %13 = vector.shape_cast %12 : vector<1x8x1x8x16xbf16> to vector<8x8x16xbf16>
    %14 = vector.shape_cast %11 : vector<8x8x16xbf16> to vector<1x8x1x8x16xbf16>
    tpu.vector_store %arg4[%c0_8, %c0_9, %c0_10, %c0_11, %c0_12], %14 {strides = array<i32>} : memref<1x8x2x8x16xbf16, #tpu.memory_space<vmem>>, vector<1x8x1x8x16xbf16>,
    %c1 = arith.constant 1 : index
    %c0_13 = arith.constant 0 : index
    %c0_14 = arith.constant 0 : index
    %15 = vector.load %arg2[%c1, %c0_13, %c0_14] : memref<2x8x16xbf16, #tpu.memory_space<vmem>>, vector<1x8x16xbf16>
    %16 = vector.shape_cast %15 : vector<1x8x16xbf16> to vector<8x16xbf16>
    %cst_15 = arith.constant dense<0.000000e+00> : vector<64x16xf32>
    %17 = tpu.matmul %3, %16, %cst_15 {dimension_numbers = #tpu.dot_dimension_numbers<[1], [0], [0], [1], [0, 0, 1, 1], [], []>} : vector<64x8xbf16>, vector<8x16xbf16>, vector<64x16xf32> -> vector<64x16xf32>
    %c0_16 = arith.constant 0 : index
    %c0_17 = arith.constant 0 : index
    %18 = vector.load %arg3[%c0_16, %c0_17] : memref<1x16xf32, #tpu.memory_space<vmem>>, vector<1x16xf32>
    %19 = vector.broadcast %18 : vector<1x16xf32> to vector<64x16xf32>
    %20 = arith.addf %17, %19 : vector<64x16xf32>
    %21 = vector.shape_cast %20 : vector<64x16xf32> to vector<8x8x16xf32>
    %22 = arith.truncf %21 : vector<8x8x16xf32> to vector<8x8x16xbf16>
    %c0_18 = arith.constant 0 : index
    %c0_19 = arith.constant 0 : index
    %c1_20 = arith.constant 1 : index
    %c0_21 = arith.constant 0 : index
    %c0_22 = arith.constant 0 : index
    %23 = vector.load %arg4[%c0_18, %c0_19, %c1_20, %c0_21, %c0_22] : memref<1x8x2x8x16xbf16, #tpu.memory_space<vmem>>, vector<1x8x1x8x16xbf16>
    %24 = vector.shape_cast %23 : vector<1x8x1x8x16xbf16> to vector<8x8x16xbf16>
    %25 = vector.shape_cast %22 : vector<8x8x16xbf16> to vector<1x8x1x8x16xbf16>
    tpu.vector_store %arg4[%c0_18, %c0_19, %c1_20, %c0_21, %c0_22], %25 {strides = array<i32>} : memref<1x8x2x8x16xbf16, #tpu.memory_space<vmem>>, vector<1x8x1x8x16xbf16>,
    return
  }
  func.func @transform_0(%arg0: i32) -> (i32, i32, i32, i32) {
    %c0_i32 = arith.constant 0 : i32
    %c0_i32_0 = arith.constant 0 : i32
    %c0_i32_1 = arith.constant 0 : i32
    %c0_i32_2 = arith.constant 0 : i32
    return %arg0, %c0_i32, %c0_i32_0, %c0_i32_1 : i32, i32, i32, i32
  }
  func.func @transform_1(%arg0: i32) -> (i32, i32, i32) {
    %c0_i32 = arith.constant 0 : i32
    %c0_i32_0 = arith.constant 0 : i32
    %c0_i32_1 = arith.constant 0 : i32
    %c0_i32_2 = arith.constant 0 : i32
    return %c0_i32, %c0_i32_0, %c0_i32_1 : i32, i32, i32
  }
  func.func @transform_2(%arg0: i32) -> (i32, i32) {
    %c0_i32 = arith.constant 0 : i32
    %c0_i32_0 = arith.constant 0 : i32
    %c0_i32_1 = arith.constant 0 : i32
    return %c0_i32, %c0_i32_0 : i32, i32
  }
  func.func @transform_3(%arg0: i32) -> (i32, i32, i32, i32, i32) {
    %c0_i32 = arith.constant 0 : i32
    %c0_i32_0 = arith.constant 0 : i32
    %c0_i32_1 = arith.constant 0 : i32
    %c0_i32_2 = arith.constant 0 : i32
    %c0_i32_3 = arith.constant 0 : i32
    return %arg0, %c0_i32, %c0_i32_0, %c0_i32_1, %c0_i32_2 : i32, i32, i32, i32, i32
  }
}

</mosaic_0001>

<llo_original>
// kernel: tpu_custom_call.1
$region0: #{tpu_custom_call.1}
  #allocation0 [shape = 'u32[]', space=smem, size = 0x4, offset = 0x4, fixed_abs, tag = 'smem constant byte address 0x4 - core index']
  #allocation1 [shape = 'u32[144,128]{1,0:T(1,128)}', space=vmem, size = 0x12000, scoped, tag = 'internal scratch']
  %s0 = inlined_call_operand.hbm [shape: f32[2,8,8,8], index: 0, kind: input, shape index: {}]
  %s1 = inlined_call_operand.hbm [shape: bf16[2,8,16], index: 1, kind: input, shape index: {}]
  %s2 = inlined_call_operand.vmem [shape: f32[1,16], index: 2, kind: input, shape index: {}]
  %s3 = inlined_call_operand.hbm [shape: bf16[2,8,2,8,16], index: 3, kind: output, shape index: {}]
  %s4 = sld [smem:[#allocation0]]
  $region53: #{tpu_custom_call.1} parent=0
    _
  %s6 = ssub.s32 1, %s4
  %s7 = scalar_select 0, %s6, %s4
  $region1: #{tpu_custom_call.1} parent=0
    #allocation2 [shape = 'u8[65536]{0}', space=vmem, size = 0x10000, scoped, tag = 'input window, operand 0']
    #allocation3 [shape = 's32[2]{0}', space=sflag, size = 0x8, scoped, tag = 'scoped memory for tpu_custom_call.1']
    #allocation4 [shape = 's32[2]{0}', space=sflag, size = 0x8, scoped, tag = 'scoped memory for tpu_custom_call.1']
    #allocation5 [shape = 'u8[4096]{0}', space=vmem, size = 0x1000, scoped, tag = 'input window, operand 1, single buffered']
    #allocation6 [shape = 's32[1]{0}', space=sflag, size = 0x4, scoped, tag = 'scoped memory for tpu_custom_call.1']
    #allocation7 [shape = 'u8[65536]{0}', space=vmem, size = 0x10000, scoped, tag = 'output window, operand 0']
    %8 = vsyncpa [#allocation3], 0
    %s9 = scalar_lea.sflag [#allocation3], 1
    %10 = vsyncpa %s9, 0
    %11 = vsyncpa [#allocation6], 0
    %12 = vsyncpa [#allocation4], 0
    %s13 = scalar_lea.sflag [#allocation4], 1
    %14 = vsyncpa %s13, 0
    loop: start=0, step=1, limit=4
    $region2: #{tpu_custom_call.1} parent=1 // loop_pre_header
      _
    $region3: #{tpu_custom_call.1} parent=1 // loop_header
      %s16 = sphi 0, %s20
      %p17 = scmp.ge.s32.totalorder %s16, 4
      %s26 = sphi 0, %s28
      %s29 = sphi 0, %s26
      %s30 = sphi 0, %s29
      %s46 = sphi 0, %s30
      %s50 = sphi 0, %s50
      %s52 = sphi 0, %s50
      %s53 = sphi 0, %s52
      %s67 = sphi 0, %s53
      %s71 = sphi 0, %s71
      %s73 = sphi 0, %s71
      %s74 = sphi 0, %s73
      %s88 = sphi 0, %s74
      %s94 = sphi 0, %s96
      %s97 = sphi 0, %s94
      %s98 = sphi 0, %s97
      %s114 = sphi 0, %s98
    $region4: #{tpu_custom_call.1} parent=1 // loop_header_branch
      %19 = sbr.rel (%p17) target = $region8
    $region5: #{tpu_custom_call.1} parent=1 // loop_body
      %s21 = ssub.s32 %s16, 1
      %s22 = ssub.s32 %s16, 2
      %s23 = sadd.s32 %s16, 1
      %s24 = ssub.s32 %s16, %s23
      %p25 = scmp.eq.s32.totalorder %s24, 0
      %s27 = sadd.s32 %s26, 1
      %s28 = scalar_select %p25, %s26, %s27
      %p31 = pneg %p25
      %p32 = scmp.eq.s32.totalorder %s16, 1
      %p33 = por %p31, %p32
      %p34 = scmp.ne.s32.totalorder %s26, %s29
      %p35 = scmp.eq.s32.totalorder %s16, 0
      %p36 = por %p34, %p35
      %p37 = scmp.ne.s32.totalorder %s26, %s29
      %p38 = scmp.eq.s32.totalorder %s21, 1
      %p39 = por %p37, %p38
      %p40 = scmp.ne.s32.totalorder %s29, %s30
      %p41 = scmp.eq.s32.totalorder %s21, 0
      %p42 = por %p40, %p41
      %p43 = scmp.ne.s32.totalorder %s29, %s30
      %p44 = scmp.eq.s32.totalorder %s22, 1
      %p45 = por %p43, %p44
      %p47 = scmp.ne.s32.totalorder %s30, %s46
      %p48 = scmp.eq.s32.totalorder %s22, 0
      %p49 = por %p47, %p48
      %s51 = sadd.s32 %s50, 1
      %p54 = scmp.eq.s32.totalorder %s16, 1
      %p55 = scmp.ne.s32.totalorder %s50, %s52
      %p56 = scmp.eq.s32.totalorder %s16, 0
      %p57 = por %p55, %p56
      %p58 = scmp.ne.s32.totalorder %s50, %s52
      %p59 = scmp.eq.s32.totalorder %s21, 1
      %p60 = por %p58, %p59
      %p61 = scmp.ne.s32.totalorder %s52, %s53
      %p62 = scmp.eq.s32.totalorder %s21, 0
      %p63 = por %p61, %p62
      %p64 = scmp.ne.s32.totalorder %s52, %s53
      %p65 = scmp.eq.s32.totalorder %s22, 1
      %p66 = por %p64, %p65
      %p68 = scmp.ne.s32.totalorder %s53, %s67
      %p69 = scmp.eq.s32.totalorder %s22, 0
      %p70 = por %p68, %p69
      %s72 = sadd.s32 %s71, 1
      %p75 = scmp.eq.s32.totalorder %s16, 1
      %p76 = scmp.ne.s32.totalorder %s71, %s73
      %p77 = scmp.eq.s32.totalorder %s16, 0
      %p78 = por %p76, %p77
      %p79 = scmp.ne.s32.totalorder %s71, %s73
      %p80 = scmp.eq.s32.totalorder %s21, 1
      %p81 = por %p79, %p80
      %p82 = scmp.ne.s32.totalorder %s73, %s74
      %p83 = scmp.eq.s32.totalorder %s21, 0
      %p84 = por %p82, %p83
      %p85 = scmp.ne.s32.totalorder %s73, %s74
      %p86 = scmp.eq.s32.totalorder %s22, 1
      %p87 = por %p85, %p86
      %p89 = scmp.ne.s32.totalorder %s74, %s88
      %p90 = scmp.eq.s32.totalorder %s22, 0
      %p91 = por %p89, %p90
      %s92 = ssub.s32 %s16, %s23
      %p93 = scmp.eq.s32.totalorder %s92, 0
      %s95 = sadd.s32 %s94, 1
      %s96 = scalar_select %p93, %s94, %s95
      %p99 = pneg %p93
      %p100 = scmp.eq.s32.totalorder %s16, 1
      %p101 = por %p99, %p100
      %p102 = scmp.ne.s32.totalorder %s94, %s97
      %p103 = scmp.eq.s32.totalorder %s16, 0
      %p104 = por %p102, %p103
      %p105 = scmp.ne.s32.totalorder %s94, %s97
      %p106 = scmp.eq.s32.totalorder %s21, 1
      %p107 = por %p105, %p106
      %p108 = scmp.ne.s32.totalorder %s97, %s98
      %p109 = scmp.eq.s32.totalorder %s21, 0
      %p110 = por %p108, %p109
      %p111 = scmp.ne.s32.totalorder %s97, %s98
      %p112 = scmp.eq.s32.totalorder %s22, 1
      %p113 = por %p111, %p112
      %p115 = scmp.ne.s32.totalorder %s98, %s114
      %p116 = scmp.eq.s32.totalorder %s22, 0
      %p117 = por %p115, %p116
      %p118 = scmp.le.s32.totalorder 1, %s16
      %p119 = scmp.lt.s32.totalorder %s16, 3
      %p120 = pnand %p118, %p119
      %p121 = pneg %p120
      // Predicated region
      $region9: #{tpu_custom_call.1} parent=5 // pred_check
        _
      $region10: #{tpu_custom_call.1} parent=5 // pred_check_branch
        %123 = sbr.rel (%p120) target = $region12
      $region11: #{tpu_custom_call.1} parent=5 // pred_region
        %s124 = ssub.s32 %s16, 1
        // Predicated region
        $region13: #{tpu_custom_call.1} parent=11 // pred_check
          %p125 = pneg %p63
        $region14: #{tpu_custom_call.1} parent=11 // pred_check_branch
          %127 = sbr.rel (%p125) target = $region16
        $region15: #{tpu_custom_call.1} parent=11 // pred_region
          %s129 = ssub.s32 128, 128
          %130 = vsyncadd [#allocation6], %s129
          %s131 = sshll.u32 [#allocation5], 4
          %s132 = int_to_ptr.vmem [resolvable:$true] %s131
          %137 = dma.hbm_to_vmem [thread:$0]  %s1, 128, %s132, [#allocation6], 64, 64, 4
        $region16: #{tpu_custom_call.1} parent=11 // pred_fallthru
          _
        // Predicated region
        $region17: #{tpu_custom_call.1} parent=11 // pred_check
          %p138 = pneg %p84
        $region18: #{tpu_custom_call.1} parent=11 // pred_check_branch
          %140 = sbr.rel (%p138) target = $region20
        $region19: #{tpu_custom_call.1} parent=11 // pred_region
          _
        $region20: #{tpu_custom_call.1} parent=11 // pred_fallthru
          _
      $region12: #{tpu_custom_call.1} parent=5 // pred_fallthru
        _
      %p141 = scmp.lt.s32.totalorder %s16, 2
      // Predicated region
      $region21: #{tpu_custom_call.1} parent=5 // pred_check
        %p142 = pneg %p141
      $region22: #{tpu_custom_call.1} parent=5 // pred_check_branch
        %144 = sbr.rel (%p142) target = $region24
      $region23: #{tpu_custom_call.1} parent=5 // pred_region
        // Predicated region
        $region25: #{tpu_custom_call.1} parent=23 // pred_check
          %p145 = pneg %p36
        $region26: #{tpu_custom_call.1} parent=23 // pred_check_branch
          %147 = sbr.rel (%p145) target = $region28
        $region27: #{tpu_custom_call.1} parent=23 // pred_region
          %s148 = sand.u32 %s26, 1
          %s149 = scalar_lea.sflag [#allocation3], %s148
          %s150 = sand.u32 %s26, 1
          %s151 = smul.addr %s150, 64
          %s152 = scalar_lea.vmem [#allocation2], %s151
          %s154 = ssub.s32 1024, 1024
          %155 = vsyncadd %s149, %s154
          %s156 = smul.addr %s16, 8
          %s157 = smul.addr %s156, 128
          %s158 = scalar_lea.hbm %s0, %s157
          %s159 = sshll.u32 %s152, 4
          %s160 = int_to_ptr.vmem [resolvable:$true] %s159
          %165 = dma.hbm_to_vmem [thread:$0]  %s158, 1024, %s160, %s149, 128, 128, 8
        $region28: #{tpu_custom_call.1} parent=23 // pred_fallthru
          _
      $region24: #{tpu_custom_call.1} parent=5 // pred_fallthru
        _
      %p166 = scmp.le.s32.totalorder 1, %s16
      %p167 = scmp.lt.s32.totalorder %s16, 3
      %p168 = pnand %p166, %p167
      %p169 = pneg %p168
      // Predicated region
      $region29: #{tpu_custom_call.1} parent=5 // pred_check
        _
      $region30: #{tpu_custom_call.1} parent=5 // pred_check_branch
        %171 = sbr.rel (%p168) target = $region32
      $region31: #{tpu_custom_call.1} parent=5 // pred_region
        %s172 = ssub.s32 %s16, 1
        %s173 = sand.u32 %s29, 1
        %s174 = scalar_lea.sflag [#allocation3], %s173
        %s175 = sand.u32 %s29, 1
        %s176 = smul.addr %s175, 64
        %s177 = scalar_lea.vmem [#allocation2], %s176
        // Predicated region
        $region33: #{tpu_custom_call.1} parent=31 // pred_check
          %p178 = pneg %p42
        $region34: #{tpu_custom_call.1} parent=31 // pred_check_branch
          %180 = sbr.rel (%p178) target = $region36
        $region35: #{tpu_custom_call.1} parent=31 // pred_region
          %181 = dma.done %s174, 1024
        $region36: #{tpu_custom_call.1} parent=31 // pred_fallthru
          _
        // Predicated region
        $region37: #{tpu_custom_call.1} parent=31 // pred_check
          %p182 = pneg %p63
        $region38: #{tpu_custom_call.1} parent=31 // pred_check_branch
          %184 = sbr.rel (%p182) target = $region40
        $region39: #{tpu_custom_call.1} parent=31 // pred_region
          %185 = dma.done [#allocation6], 128
        $region40: #{tpu_custom_call.1} parent=31 // pred_fallthru
          _
        %s186 = sand.u32 %s29, 1
        %s187 = scalar_lea.sflag [#allocation3], %s186
        %s188 = sand.u32 %s29, 1
        %s189 = smul.addr %s188, 64
        %s190 = scalar_lea.vmem [#allocation2], %s189
        %p191 = pneg %p42
        %p192 = pneg %p39
        %p193 = pneg %p63
        %p194 = pneg %p60
        %p195 = pneg %p84
        %p196 = pneg %p81
        %p197 = pneg %p110
        %p198 = pneg %p107
        %s199 = sand.u32 %s97, 1
        %s200 = scalar_lea.sflag [#allocation4], %s199
        %s201 = sand.u32 %s97, 1
        %s202 = smul.addr %s201, 64
        %s203 = scalar_lea.vmem [#allocation7], %s202
        %v205 = vld [vmem:[%s177] sm:$0xff]
        %v206 = vld [vmem:[%s177 + $0x8] sm:$0xff]
        %v207 = vld [vmem:[%s177 + $0x10] sm:$0xff]
        %v208 = vld [vmem:[%s177 + $0x18] sm:$0xff]
        %v209 = vld [vmem:[%s177 + $0x20] sm:$0xff]
        %v210 = vld [vmem:[%s177 + $0x28] sm:$0xff]
        %v211 = vld [vmem:[%s177 + $0x30] sm:$0xff]
        %v212 = vld [vmem:[%s177 + $0x38] sm:$0xff]
        %v213 = vpack.c.bf16 %v206, %v205
        %v214 = vpack.c.bf16 %v208, %v207
        %v215 = vpack.c.bf16 %v210, %v209
        %v216 = vpack.c.bf16 %v212, %v211
        %v217 = vld [vmem:[#allocation5] sm:$0xf]
        %v218 = vld [vmem:[%s2] sm:$0x1]
        %v220 = vlaneseq
        %v221 = vshrl.u32 %v220, 7
        %v222 = vsub.s32 0, %v221
        %v223 = vrot.slane %v218, %v222
        %vm225 = vcmask 64512
        %v227 = vsel %vm225, %v213, 0
        %v230 = vsel %vm225, %v214, 0
        %v233 = vsel %vm225, %v215, 0
        %v236 = vsel %vm225, %v216, 0
        %vm238 = vcmask 1043456
        %v240 = vsel %vm238, %v217, 0
        %242 = vmatprep.subr.bf16.mxu0 0
        %243 = vmatpush1.bf16.msra.mxu0 %v240
        %244 = vmatprep.subr.bf16.mxu0 0
        %245 = vmatpush1.bf16.msra.mxu0 0
        %246 = vmatprep.subr.bf16.mxu0 0
        %247 = vmatpush1.bf16.msra.mxu0 0
        %248 = vmatprep.subr.bf16.mxu0 0
        %249 = vmatpush1.bf16.msra.mxu0 0
        %250 = vmatprep.subr.bf16.mxu0 0
        %251 = vmatpush1.bf16.msra.mxu0 0
        %252 = vmatprep.subr.bf16.mxu0 0
        %253 = vmatpush1.bf16.msra.mxu0 0
        %254 = vmatprep.subr.bf16.mxu0 0
        %255 = vmatpush1.bf16.msra.mxu0 0
        %256 = vmatprep.subr.bf16.mxu0 0
        %257 = vmatpush1.bf16.msra.mxu0 0
        %258 = vmatprep.subr.bf16.mxu0 0
        %259 = vmatpush1.bf16.msra.mxu0 0
        %260 = vmatprep.subr.bf16.mxu0 0
        %261 = vmatpush1.bf16.msra.mxu0 0
        %262 = vmatprep.subr.bf16.mxu0 0
        %263 = vmatpush1.bf16.msra.mxu0 0
        %264 = vmatprep.subr.bf16.mxu0 0
        %265 = vmatpush1.bf16.msra.mxu0 0
        %266 = vmatprep.subr.bf16.mxu0 0
        %267 = vmatpush1.bf16.msra.mxu0 0
        %268 = vmatprep.subr.bf16.mxu0 0
        %269 = vmatpush1.bf16.msra.mxu0 0
        %270 = vmatprep.subr.bf16.mxu0 0
        %271 = vmatpush1.bf16.msra.mxu0 0
        %272 = vmatprep.subr.bf16.mxu0 0
        %273 = vmatpush1.bf16.msra.mxu0 0
        %274 = vmatprep.mubr.bf16.mxu0 0
        %275 = vmatmul.mubr.bf16.gmra.mrb[0].mxu0 %v227
        %v276 = vpop.f32.mrb[0].mxu0
        %v277 = vadd.f32 %v223, %v276
        %v278 = vpop.f32.mrb[0].mxu0
        %v279 = vpop.f32.mrb[0].mxu0
        %v280 = vadd.f32 %v223, %v279
        %v281 = vpop.f32.mrb[0].mxu0
        %282 = vmatprep.mubr.bf16.mxu0 0
        %283 = vmatmul.mubr.bf16.gmra.mrb[0].mxu0 %v230
        %v284 = vpop.f32.mrb[0].mxu0
        %v285 = vadd.f32 %v223, %v284
        %v286 = vpop.f32.mrb[0].mxu0
        %v287 = vpop.f32.mrb[0].mxu0
        %v288 = vadd.f32 %v223, %v287
        %v289 = vpop.f32.mrb[0].mxu0
        %290 = vmatprep.mubr.bf16.mxu0 0
        %291 = vmatmul.mubr.bf16.gmra.mrb[0].mxu0 %v233
        %v292 = vpop.f32.mrb[0].mxu0
        %v293 = vadd.f32 %v223, %v292
        %v294 = vpop.f32.mrb[0].mxu0
        %v295 = vpop.f32.mrb[0].mxu0
        %v296 = vadd.f32 %v223, %v295
        %v297 = vpop.f32.mrb[0].mxu0
        %298 = vmatprep.mubr.bf16.mxu0 0
        %299 = vmatmul.mubr.bf16.gmra.mrb[0].mxu0 %v236
        %v300 = vpop.f32.mrb[0].mxu0
        %v301 = vadd.f32 %v223, %v300
        %v302 = vpop.f32.mrb[0].mxu0
        %v303 = vpop.f32.mrb[0].mxu0
        %v304 = vadd.f32 %v223, %v303
        %v305 = vpop.f32.mrb[0].mxu0
        %306 = vdwg.mxu0
        %v307 = vpack.c.bf16 %v277, %v277
        %v308 = vpack.c.bf16 %v280, %v280
        %v309 = vpack.c.bf16 %v285, %v285
        %v310 = vpack.c.bf16 %v288, %v288
        %v311 = vpack.c.bf16 %v293, %v293
        %v312 = vpack.c.bf16 %v296, %v296
        %v313 = vpack.c.bf16 %v301, %v301
        %v314 = vpack.c.bf16 %v304, %v304
        %vm315 = vcmask 125952
        %316 = vst.msk [vmem:[%s203] sm:$0xf] %vm315, %v307
        %317 = vst.msk [vmem:[%s203 + $0x8] sm:$0xf] %vm315, %v308
        %318 = vst.msk [vmem:[%s203 + $0x10] sm:$0xf] %vm315, %v309
        %319 = vst.msk [vmem:[%s203 + $0x18] sm:$0xf] %vm315, %v310
        %320 = vst.msk [vmem:[%s203 + $0x20] sm:$0xf] %vm315, %v311
        %321 = vst.msk [vmem:[%s203 + $0x28] sm:$0xf] %vm315, %v312
        %322 = vst.msk [vmem:[%s203 + $0x30] sm:$0xf] %vm315, %v313
        %323 = vst.msk [vmem:[%s203 + $0x38] sm:$0xf] %vm315, %v314
        %s324 = scalar_lea.vmem [#allocation5], 4
        %v325 = vld [vmem:[%s324] sm:$0xf]
        %v326 = vld [vmem:[%s2] sm:$0x1]
        %v328 = vlaneseq
        %v329 = vshrl.u32 %v328, 7
        %v330 = vsub.s32 0, %v329
        %v331 = vrot.slane %v326, %v330
        %v334 = vsel %vm238, %v325, 0
        %336 = vmatprep.subr.bf16.mxu0 0
        %337 = vmatpush1.bf16.msra.mxu0 %v334
        %338 = vmatprep.subr.bf16.mxu0 0
        %339 = vmatpush1.bf16.msra.mxu0 0
        %340 = vmatprep.subr.bf16.mxu0 0
        %341 = vmatpush1.bf16.msra.mxu0 0
        %342 = vmatprep.subr.bf16.mxu0 0
        %343 = vmatpush1.bf16.msra.mxu0 0
        %344 = vmatprep.subr.bf16.mxu0 0
        %345 = vmatpush1.bf16.msra.mxu0 0
        %346 = vmatprep.subr.bf16.mxu0 0
        %347 = vmatpush1.bf16.msra.mxu0 0
        %348 = vmatprep.subr.bf16.mxu0 0
        %349 = vmatpush1.bf16.msra.mxu0 0
        %350 = vmatprep.subr.bf16.mxu0 0
        %351 = vmatpush1.bf16.msra.mxu0 0
        %352 = vmatprep.subr.bf16.mxu0 0
        %353 = vmatpush1.bf16.msra.mxu0 0
        %354 = vmatprep.subr.bf16.mxu0 0
        %355 = vmatpush1.bf16.msra.mxu0 0
        %356 = vmatprep.subr.bf16.mxu0 0
        %357 = vmatpush1.bf16.msra.mxu0 0
        %358 = vmatprep.subr.bf16.mxu0 0
        %359 = vmatpush1.bf16.msra.mxu0 0
        %360 = vmatprep.subr.bf16.mxu0 0
        %361 = vmatpush1.bf16.msra.mxu0 0
        %362 = vmatprep.subr.bf16.mxu0 0
        %363 = vmatpush1.bf16.msra.mxu0 0
        %364 = vmatprep.subr.bf16.mxu0 0
        %365 = vmatpush1.bf16.msra.mxu0 0
        %366 = vmatprep.subr.bf16.mxu0 0
        %367 = vmatpush1.bf16.msra.mxu0 0
        %368 = vmatprep.mubr.bf16.mxu0 0
        %369 = vmatmul.mubr.bf16.gmra.mrb[0].mxu0 %v227
        %v370 = vpop.f32.mrb[0].mxu0
        %v371 = vadd.f32 %v331, %v370
        %v372 = vpop.f32.mrb[0].mxu0
        %v373 = vpop.f32.mrb[0].mxu0
        %v374 = vadd.f32 %v331, %v373
        %v375 = vpop.f32.mrb[0].mxu0
        %376 = vmatprep.mubr.bf16.mxu0 0
        %377 = vmatmul.mubr.bf16.gmra.mrb[0].mxu0 %v230
        %v378 = vpop.f32.mrb[0].mxu0
        %v379 = vadd.f32 %v331, %v378
        %v380 = vpop.f32.mrb[0].mxu0
        %v381 = vpop.f32.mrb[0].mxu0
        %v382 = vadd.f32 %v331, %v381
        %v383 = vpop.f32.mrb[0].mxu0
        %384 = vmatprep.mubr.bf16.mxu0 0
        %385 = vmatmul.mubr.bf16.gmra.mrb[0].mxu0 %v233
        %v386 = vpop.f32.mrb[0].mxu0
        %v387 = vadd.f32 %v331, %v386
        %v388 = vpop.f32.mrb[0].mxu0
        %v389 = vpop.f32.mrb[0].mxu0
        %v390 = vadd.f32 %v331, %v389
        %v391 = vpop.f32.mrb[0].mxu0
        %392 = vmatprep.mubr.bf16.mxu0 0
        %393 = vmatmul.mubr.bf16.gmra.mrb[0].mxu0 %v236
        %v394 = vpop.f32.mrb[0].mxu0
        %v395 = vadd.f32 %v331, %v394
        %v396 = vpop.f32.mrb[0].mxu0
        %v397 = vpop.f32.mrb[0].mxu0
        %v398 = vadd.f32 %v331, %v397
        %v399 = vpop.f32.mrb[0].mxu0
        %400 = vdwg.mxu0
        %v401 = vpack.c.bf16 %v371, %v371
        %v402 = vpack.c.bf16 %v374, %v374
        %v403 = vpack.c.bf16 %v379, %v379
        %v404 = vpack.c.bf16 %v382, %v382
        %v405 = vpack.c.bf16 %v387, %v387
        %v406 = vpack.c.bf16 %v390, %v390
        %v407 = vpack.c.bf16 %v395, %v395
        %v408 = vpack.c.bf16 %v398, %v398
        %s409 = scalar_lea.vmem %s203, 4 [#allocation7]
        %410 = vst.msk [vmem:[%s409] sm:$0xf] %vm315, %v401
        %411 = vst.msk [vmem:[%s409 + $0x8] sm:$0xf] %vm315, %v402
        %412 = vst.msk [vmem:[%s409 + $0x10] sm:$0xf] %vm315, %v403
        %413 = vst.msk [vmem:[%s409 + $0x18] sm:$0xf] %vm315, %v404
        %414 = vst.msk [vmem:[%s409 + $0x20] sm:$0xf] %vm315, %v405
        %415 = vst.msk [vmem:[%s409 + $0x28] sm:$0xf] %vm315, %v406
        %416 = vst.msk [vmem:[%s409 + $0x30] sm:$0xf] %vm315, %v407
        %417 = vst.msk [vmem:[%s409 + $0x38] sm:$0xf] %vm315, %v408
        %s418 = sand.u32 %s97, 1
        %s419 = scalar_lea.sflag [#allocation4], %s418
        %s420 = sand.u32 %s97, 1
        %s421 = smul.addr %s420, 64
        %s422 = scalar_lea.vmem [#allocation7], %s421
        // Predicated region
        $region41: #{tpu_custom_call.1} parent=31 // pred_check
          %p423 = pneg %p107
        $region42: #{tpu_custom_call.1} parent=31 // pred_check_branch
          %425 = sbr.rel (%p423) target = $region44
        $region43: #{tpu_custom_call.1} parent=31 // pred_region
          %s427 = ssub.s32 1024, 1024
          %428 = vsyncadd %s419, %s427
          %s429 = smul.addr %s21, 16
          %s430 = smul.addr %s429, 64
          %s431 = scalar_lea.hbm %s3, %s430
          %s432 = sshll.u32 %s422, 4
          %s433 = int_to_ptr.vmem [resolvable:$true] %s432
          %438 = dma.vmem_to_hbm [thread:$0]  %s433, 1024, %s431, %s419, 64, 64, 4
        $region44: #{tpu_custom_call.1} parent=31 // pred_fallthru
          _
      $region32: #{tpu_custom_call.1} parent=5 // pred_fallthru
        _
      %p439 = scmp.le.s32.totalorder 2, %s16
      // Predicated region
      $region45: #{tpu_custom_call.1} parent=5 // pred_check
        %p440 = pneg %p439
      $region46: #{tpu_custom_call.1} parent=5 // pred_check_branch
        %442 = sbr.rel (%p440) target = $region48
      $region47: #{tpu_custom_call.1} parent=5 // pred_region
        %s443 = ssub.s32 %s16, 2
        // Predicated region
        $region49: #{tpu_custom_call.1} parent=47 // pred_check
          %p444 = pneg %p113
        $region50: #{tpu_custom_call.1} parent=47 // pred_check_branch
          %446 = sbr.rel (%p444) target = $region52
        $region51: #{tpu_custom_call.1} parent=47 // pred_region
          %s447 = sand.u32 %s98, 1
          %s448 = scalar_lea.sflag [#allocation4], %s447
          %s449 = sand.u32 %s98, 1
          %s450 = smul.addr %s449, 64
          %s451 = scalar_lea.vmem [#allocation7], %s450
          %452 = dma.done %s448, 1024
        $region52: #{tpu_custom_call.1} parent=47 // pred_fallthru
          _
      $region48: #{tpu_custom_call.1} parent=5 // pred_fallthru
        _
    $region6: #{tpu_custom_call.1} parent=1 // loop_footer
      %s20 = sadd.s32 1, %s16
    $region7: #{tpu_custom_call.1} parent=1 // loop_footer_branch
      %15 = sbr.rel target = $region3
    $region8: #{tpu_custom_call.1} parent=1 // loop_exit
      _
    %453 = vsyncpa [#allocation3], 1
    %s454 = scalar_lea.sflag [#allocation3], 1
    %455 = vsyncpa %s454, 1
    %456 = vsyncpa [#allocation6], 1
    %457 = vsyncpa [#allocation4], 1
    %s458 = scalar_lea.sflag [#allocation4], 1
    %459 = vsyncpa %s458, 1

</llo_original>
